<compile_context>
chip_gen: v5e
topology: v5e:2x2
jax: 0.10.0
libtpu: 0.0.40
codegen_flags: <defaults>
</compile_context>

<pallas_src>
import jax
import jax.numpy as jnp
from jax.experimental import pallas as pl
from jax.experimental.pallas import tpu as pltpu

IN_DIM = 28 * 28 * 1      # 784. Left unpadded in HBM: Mosaic pads K internally
                          # (MXU cycles only); padding in HBM would add ~14% DMA
                          # on the dominant x stream of a memory-bound kernel.
H1_PAD = 128              # 120 -> 128 lanes
H2_PAD = 128              # 84  -> 128 lanes
OUT_PAD = 128             # 5   -> 128 lanes (unmasked lane-dense stores)
OUT_DIM = 5


def _pad2(a, rows, cols):
    return jnp.pad(a, ((0, rows - a.shape[0]), (0, cols - a.shape[1])))


def nnet_kernel(x_ref, w1_ref, b1_ref, w2_ref, b2_ref, w3_ref, b3_ref, o_ref):
    """One (TB, 784) batch tile -> (TB, 128) logit tile (cols >= 5 are zero pad)."""
    # MXU-operand cast happens here (in-kernel), not in the wrapper. The weight
    # dtype selects bf16 (fast MXU, default) or f32 (bit-faithful) operands;
    # accumulation / bias-add / ReLU are always f32 (v5e has no bf16 VPU).
    x = x_ref[...].astype(w1_ref.dtype)

    # fc1 + relu : (TB, 784) @ (784, 128) -> f32 accumulate
    h1 = jnp.dot(x, w1_ref[...], preferred_element_type=jnp.float32) + b1_ref[...]
    h1 = jnp.maximum(h1, 0.0)

    # fc2 + relu : (TB, 128) @ (128, 128)
    h2 = jnp.dot(h1.astype(w2_ref.dtype), w2_ref[...],
                 preferred_element_type=jnp.float32) + b2_ref[...]
    h2 = jnp.maximum(h2, 0.0)

    # fc3 : (TB, 128) @ (128, 128)
    out = jnp.dot(h2.astype(w3_ref.dtype), w3_ref[...],
                  preferred_element_type=jnp.float32) + b3_ref[...]
    o_ref[...] = out.astype(o_ref.dtype)


def prepare_params(params, matmul_dtype=jnp.bfloat16):
    """Pad weights/biases to 128 lanes and cast weights once (reuse across calls)."""
    w1, b1, w2, b2, w3, b3 = params
    return (
        _pad2(w1, IN_DIM, H1_PAD).astype(matmul_dtype),
        _pad2(b1.reshape(1, -1), 1, H1_PAD).astype(jnp.float32),
        _pad2(w2, H1_PAD, H2_PAD).astype(matmul_dtype),
        _pad2(b2.reshape(1, -1), 1, H2_PAD).astype(jnp.float32),
        _pad2(w3, H2_PAD, OUT_PAD).astype(matmul_dtype),
        _pad2(b3.reshape(1, -1), 1, OUT_PAD).astype(jnp.float32),
    )


def nnet_forward(x_nchw, prepared_params, *, tile_b=2048):
    """x_nchw: (B, 1, 28, 28) float32. Returns (B, 5) float32 logits."""
    assert tile_b % 8 == 0, "tile_b must be a multiple of 8 (f32 sublane tile)"
    w1p, b1p, w2p, b2p, w3p, b3p = prepared_params
    B = x_nchw.shape[0]

    # Equivalent of torch x.view(-1, 28*28*1); free for contiguous NCHW.
    x = x_nchw.reshape(B, IN_DIM)

    # Either one full-batch block (small / ragged B equals the array dim, so the
    # (8,128) rule is satisfied) or tile_b-row blocks with a cdiv grid whose
    # partial trailing block is masked by Pallas. No jnp.pad / astype of x in
    # the wrapper -> no extra HBM passes over the dominant x stream.
    TB = min(tile_b, B)
    grid = (pl.cdiv(B, TB),)
    const2d = lambda i: (0, 0)  # weights/biases: one block, VMEM-resident

    out_padded = pl.pallas_call(
        nnet_kernel,
        out_shape=jax.ShapeDtypeStruct((B, OUT_PAD), jnp.float32),
        grid=grid,
        in_specs=[
            pl.BlockSpec((TB, IN_DIM), lambda i: (i, 0)),   # x: streamed over batch
            pl.BlockSpec((IN_DIM, H1_PAD), const2d),        # w1
            pl.BlockSpec((1, H1_PAD), const2d),             # b1
            pl.BlockSpec((H1_PAD, H2_PAD), const2d),        # w2
            pl.BlockSpec((1, H2_PAD), const2d),             # b2
            pl.BlockSpec((H2_PAD, OUT_PAD), const2d),       # w3
            pl.BlockSpec((1, OUT_PAD), const2d),            # b3
        ],
        out_specs=pl.BlockSpec((TB, OUT_PAD), lambda i: (i, 0)),
        compiler_params=pltpu.CompilerParams(
            # Shard batch tiles across v7x's two TensorCores (no-op on v5e/v6e).
            dimension_semantics=("parallel",),
            # TB=2048 f32 x-tiles double-buffered (~13 MiB) + outputs + bf16
            # weights + temps ~= 17-22 MiB: over v5e's 16 MiB default scope,
            # comfortably within 32 MiB (v6e/v7x default scope, v7x 64 MiB phys).
            vmem_limit_bytes=32 * 1024 * 1024,
        ),
    )(x, w1p, b1p, w2p, b2p, w3p, b3p)

    return out_padded[:, :OUT_DIM]


def init_params(key):
    """Deterministic init mimicking nn.Linear's U(-1/sqrt(fan_in), 1/sqrt(fan_in))."""
    def linear(k, fan_in, fan_out):
        kw, kb = jax.random.split(k)
        bound = 1.0 / jnp.sqrt(fan_in)
        # stored as (in, out) so the kernel does x @ W
        w = jax.random.uniform(kw, (fan_in, fan_out), jnp.float32, -bound, bound)
        b = jax.random.uniform(kb, (fan_out,), jnp.float32, -bound, bound)
        return w, b

    k1, k2, k3 = jax.random.split(key, 3)
    w1, b1 = linear(k1, IN_DIM, 120)
    w2, b2 = linear(k2, 120, 84)
    w3, b3 = linear(k3, 84, OUT_DIM)
    return (w1, b1, w2, b2, w3, b3)


def _reference(x_nchw, params):
    w1, b1, w2, b2, w3, b3 = params
    xr = x_nchw.reshape(x_nchw.shape[0], -1)
    h = jnp.maximum(xr @ w1 + b1, 0.0)
    h = jnp.maximum(h @ w2 + b2, 0.0)
    return h @ w3 + b3


if __name__ == "__main__":
    key = jax.random.PRNGKey(0)
    kx, kp, kx2 = jax.random.split(key, 3)

    params = init_params(kp)
    prep_bf16 = prepare_params(params)                           # default fast path
    prep_f32 = prepare_params(params, matmul_dtype=jnp.float32)  # bit-faithful path

    # Small batch (single tile), matching the original B=2 test.
    B = 2
    x = jax.random.normal(kx, (B, 1, 28, 28), dtype=jnp.float32)
    ref = _reference(x, params)

    out_f32 = jax.block_until_ready(nnet_forward(x, prep_f32))
    assert out_f32.shape == (B, OUT_DIM)
    assert jnp.allclose(out_f32, ref, atol=1e-4, rtol=1e-4)

    out_bf16 = jax.block_until_ready(nnet_forward(x, prep_bf16))
    assert out_bf16.shape == (B, OUT_DIM)
    assert jnp.allclose(out_bf16, ref, atol=5e-2, rtol=5e-2)

    # Ragged batch with a small tile to exercise the cdiv grid + partial tail
    # (no wrapper-side padding of x).
    B2 = 1027
    x2 = jax.random.normal(kx2, (B2, 1, 28, 28), dtype=jnp.float32)
    ref2 = _reference(x2, params)

    out2_f32 = jax.block_until_ready(nnet_forward(x2, prep_f32, tile_b=256))
    assert out2_f32.shape == (B2, OUT_DIM)
    assert jnp.allclose(out2_f32, ref2, atol=1e-3, rtol=1e-3)

    out2_bf16 = jax.block_until_ready(nnet_forward(x2, prep_bf16, tile_b=256))
    assert jnp.allclose(out2_bf16, ref2, atol=5e-2, rtol=5e-2)

    print("KERNEL_OK")
</pallas_src>

<mosaic_0001>
module attributes {stable_mosaic.version = 11 : i64} {
  func.func @nnet_kernel(%arg0: i32, %arg1: memref<2x784xf32, #tpu.memory_space<vmem>>, %arg2: memref<784x128xf32, #tpu.memory_space<vmem>>, %arg3: memref<1x128xf32, #tpu.memory_space<vmem>>, %arg4: memref<128x128xf32, #tpu.memory_space<vmem>>, %arg5: memref<1x128xf32, #tpu.memory_space<vmem>>, %arg6: memref<128x128xf32, #tpu.memory_space<vmem>>, %arg7: memref<1x128xf32, #tpu.memory_space<vmem>>, %arg8: memref<2x128xf32, #tpu.memory_space<vmem>>) attributes {dimension_semantics = [#tpu.dimension_semantics<parallel>], iteration_bounds = array<i64: 1>, scalar_prefetch = 0 : i64, scratch_operands = 0 : i64, tpu.core_type = #tpu.core_type<tc>, window_params = [{transform_indices = @transform_0, window_bounds = array<i64: 2, 784>}, {pipeline_mode = #tpu.pipeline_mode<synchronous>, transform_indices = @transform_1, window_bounds = array<i64: 784, 128>}, {pipeline_mode = #tpu.pipeline_mode<synchronous>, transform_indices = @transform_2, window_bounds = array<i64: 1, 128>}, {pipeline_mode = #tpu.pipeline_mode<synchronous>, transform_indices = @transform_3, window_bounds = array<i64: 128, 128>}, {pipeline_mode = #tpu.pipeline_mode<synchronous>, transform_indices = @transform_4, window_bounds = array<i64: 1, 128>}, {pipeline_mode = #tpu.pipeline_mode<synchronous>, transform_indices = @transform_5, window_bounds = array<i64: 128, 128>}, {pipeline_mode = #tpu.pipeline_mode<synchronous>, transform_indices = @transform_6, window_bounds = array<i64: 1, 128>}, {transform_indices = @transform_7, window_bounds = array<i64: 2, 128>}]} {
    %c0 = arith.constant 0 : index
    %c0_0 = arith.constant 0 : index
    %0 = vector.load %arg1[%c0, %c0_0] : memref<2x784xf32, #tpu.memory_space<vmem>>, vector<2x784xf32>
    %c0_1 = arith.constant 0 : index
    %c0_2 = arith.constant 0 : index
    %1 = vector.load %arg2[%c0_1, %c0_2] : memref<784x128xf32, #tpu.memory_space<vmem>>, vector<784x128xf32>
    %cst = arith.constant dense<0.000000e+00> : vector<2x128xf32>
    %2 = tpu.matmul %0, %1, %cst {dimension_numbers = #tpu.dot_dimension_numbers<[1], [0], [0], [1], [0, 0, 1, 1], [], []>} : vector<2x784xf32>, vector<784x128xf32>, vector<2x128xf32> -> vector<2x128xf32>
    %c0_3 = arith.constant 0 : index
    %c0_4 = arith.constant 0 : index
    %3 = vector.load %arg3[%c0_3, %c0_4] : memref<1x128xf32, #tpu.memory_space<vmem>>, vector<1x128xf32>
    %4 = vector.broadcast %3 : vector<1x128xf32> to vector<2x128xf32>
    %5 = arith.addf %2, %4 : vector<2x128xf32>
    %cst_5 = arith.constant 0.000000e+00 : f32
    %6 = vector.broadcast %cst_5 : f32 to vector<2x128xf32>
    %7 = arith.maximumf %5, %6 : vector<2x128xf32>
    %c0_6 = arith.constant 0 : index
    %c0_7 = arith.constant 0 : index
    %8 = vector.load %arg4[%c0_6, %c0_7] : memref<128x128xf32, #tpu.memory_space<vmem>>, vector<128x128xf32>
    %cst_8 = arith.constant dense<0.000000e+00> : vector<2x128xf32>
    %9 = tpu.matmul %7, %8, %cst_8 {dimension_numbers = #tpu.dot_dimension_numbers<[1], [0], [0], [1], [0, 0, 1, 1], [], []>} : vector<2x128xf32>, vector<128x128xf32>, vector<2x128xf32> -> vector<2x128xf32>
    %c0_9 = arith.constant 0 : index
    %c0_10 = arith.constant 0 : index
    %10 = vector.load %arg5[%c0_9, %c0_10] : memref<1x128xf32, #tpu.memory_space<vmem>>, vector<1x128xf32>
    %11 = vector.broadcast %10 : vector<1x128xf32> to vector<2x128xf32>
    %12 = arith.addf %9, %11 : vector<2x128xf32>
    %cst_11 = arith.constant 0.000000e+00 : f32
    %13 = vector.broadcast %cst_11 : f32 to vector<2x128xf32>
    %14 = arith.maximumf %12, %13 : vector<2x128xf32>
    %c0_12 = arith.constant 0 : index
    %c0_13 = arith.constant 0 : index
    %15 = vector.load %arg6[%c0_12, %c0_13] : memref<128x128xf32, #tpu.memory_space<vmem>>, vector<128x128xf32>
    %cst_14 = arith.constant dense<0.000000e+00> : vector<2x128xf32>
    %16 = tpu.matmul %14, %15, %cst_14 {dimension_numbers = #tpu.dot_dimension_numbers<[1], [0], [0], [1], [0, 0, 1, 1], [], []>} : vector<2x128xf32>, vector<128x128xf32>, vector<2x128xf32> -> vector<2x128xf32>
    %c0_15 = arith.constant 0 : index
    %c0_16 = arith.constant 0 : index
    %17 = vector.load %arg7[%c0_15, %c0_16] : memref<1x128xf32, #tpu.memory_space<vmem>>, vector<1x128xf32>
    %18 = vector.broadcast %17 : vector<1x128xf32> to vector<2x128xf32>
    %19 = arith.addf %16, %18 : vector<2x128xf32>
    %c0_17 = arith.constant 0 : index
    %c0_18 = arith.constant 0 : index
    %20 = vector.load %arg8[%c0_17, %c0_18] : memref<2x128xf32, #tpu.memory_space<vmem>>, vector<2x128xf32>
    tpu.vector_store %arg8[%c0_17, %c0_18], %19 {strides = array<i32>} : memref<2x128xf32, #tpu.memory_space<vmem>>, vector<2x128xf32>,
    return
  }
  func.func @transform_0(%arg0: i32) -> (i32, i32) {
    %c0_i32 = arith.constant 0 : i32
    %c0_i32_0 = arith.constant 0 : i32
    return %arg0, %c0_i32 : i32, i32
  }
  func.func @transform_1(%arg0: i32) -> (i32, i32) {
    %c0_i32 = arith.constant 0 : i32
    %c0_i32_0 = arith.constant 0 : i32
    %c0_i32_1 = arith.constant 0 : i32
    return %c0_i32, %c0_i32_0 : i32, i32
  }
  func.func @transform_2(%arg0: i32) -> (i32, i32) {
    %c0_i32 = arith.constant 0 : i32
    %c0_i32_0 = arith.constant 0 : i32
    %c0_i32_1 = arith.constant 0 : i32
    return %c0_i32, %c0_i32_0 : i32, i32
  }
  func.func @transform_3(%arg0: i32) -> (i32, i32) {
    %c0_i32 = arith.constant 0 : i32
    %c0_i32_0 = arith.constant 0 : i32
    %c0_i32_1 = arith.constant 0 : i32
    return %c0_i32, %c0_i32_0 : i32, i32
  }
  func.func @transform_4(%arg0: i32) -> (i32, i32) {
    %c0_i32 = arith.constant 0 : i32
    %c0_i32_0 = arith.constant 0 : i32
    %c0_i32_1 = arith.constant 0 : i32
    return %c0_i32, %c0_i32_0 : i32, i32
  }
  func.func @transform_5(%arg0: i32) -> (i32, i32) {
    %c0_i32 = arith.constant 0 : i32
    %c0_i32_0 = arith.constant 0 : i32
    %c0_i32_1 = arith.constant 0 : i32
    return %c0_i32, %c0_i32_0 : i32, i32
  }
  func.func @transform_6(%arg0: i32) -> (i32, i32) {
    %c0_i32 = arith.constant 0 : i32
    %c0_i32_0 = arith.constant 0 : i32
    %c0_i32_1 = arith.constant 0 : i32
    return %c0_i32, %c0_i32_0 : i32, i32
  }
  func.func @transform_7(%arg0: i32) -> (i32, i32) {
    %c0_i32 = arith.constant 0 : i32
    %c0_i32_0 = arith.constant 0 : i32
    return %arg0, %c0_i32 : i32, i32
  }
}

</mosaic_0001>

<llo_original>
// kernel: tpu_custom_call.1
$region0: #{tpu_custom_call.1}
  #allocation0 [shape = 'u32[]', space=smem, size = 0x4, offset = 0x4, fixed_abs, tag = 'smem constant byte address 0x4 - core index']
  #allocation1 [shape = 'u32[72,128]{1,0:T(1,128)}', space=vmem, size = 0x9000, scoped, tag = 'internal scratch']
  %s0 = inlined_call_operand.hbm [shape: f32[2,784], index: 0, kind: input, shape index: {}]
  %s1 = inlined_call_operand.hbm [shape: f32[784,128], index: 1, kind: input, shape index: {}]
  %s2 = inlined_call_operand.vmem [shape: f32[1,128], index: 2, kind: input, shape index: {}]
  %s3 = inlined_call_operand.hbm [shape: f32[128,128], index: 3, kind: input, shape index: {}]
  %s4 = inlined_call_operand.vmem [shape: f32[1,128], index: 4, kind: input, shape index: {}]
  %s5 = inlined_call_operand.hbm [shape: f32[128,128], index: 5, kind: input, shape index: {}]
  %s6 = inlined_call_operand.vmem [shape: f32[1,128], index: 6, kind: input, shape index: {}]
  %s7 = inlined_call_operand.hbm [shape: f32[2,128], index: 7, kind: output, shape index: {}]
  %s8 = sld [smem:[#allocation0]]
  $region54: #{tpu_custom_call.1} parent=0
    _
  %s10 = ssub.s32 1, %s8
  %s11 = scalar_select 0, %s10, %s8
  $region1: #{tpu_custom_call.1} parent=0
    #allocation2 [shape = 'u8[7168]{0}', space=vmem, size = 0x1c00, scoped, tag = 'input window, operand 0, single buffered']
    #allocation3 [shape = 's32[1]{0}', space=sflag, size = 0x4, scoped, tag = 'scoped memory for tpu_custom_call.1']
    #allocation4 [shape = 's32[1]{0}', space=sflag, size = 0x4, scoped, tag = 'scoped memory for tpu_custom_call.1']
    #allocation5 [shape = 'u8[401408]{0}', space=vmem, size = 0x62000, scoped, tag = 'input window, operand 1, single buffered']
    #allocation6 [shape = 's32[1]{0}', space=sflag, size = 0x4, scoped, tag = 'scoped memory for tpu_custom_call.1']
    #allocation7 [shape = 'u8[65536]{0}', space=vmem, size = 0x10000, scoped, tag = 'input window, operand 3, single buffered']
    #allocation8 [shape = 'u8[65536]{0}', space=vmem, size = 0x10000, scoped, tag = 'input window, operand 5, single buffered']
    #allocation9 [shape = 's32[1]{0}', space=sflag, size = 0x4, scoped, tag = 'scoped memory for tpu_custom_call.1']
    #allocation10 [shape = 'u8[1024]{0}', space=vmem, size = 0x400, scoped, tag = 'output window, operand 0, single buffered']
    %12 = vsyncpa [#allocation3], 0
    %13 = vsyncpa [#allocation6], 0
    %14 = vsyncpa [#allocation9], 0
    %15 = vsyncpa [#allocation4], 0
    // Predicated region
    $region2: #{tpu_custom_call.1} parent=1 // pred_check
      _
    $region3: #{tpu_custom_call.1} parent=1 // pred_check_branch
      %17 = sbr.rel (0) target = $region5
    $region4: #{tpu_custom_call.1} parent=1 // pred_region
      %19 = vsyncadd [#allocation3], 0
      %s21 = sshll.u32 %s0, 4
      %s22 = int_to_ptr.hbm [resolvable:$true] %s21
      %s23 = sshll.u32 [#allocation2], 4
      %s24 = int_to_ptr.vmem [resolvable:$true] %s23
      %26 = dma.hbm_to_vmem [thread:$0]  %s22, 224, %s24, [#allocation3]
    $region5: #{tpu_custom_call.1} parent=1 // pred_fallthru
      _
    // Predicated region
    $region6: #{tpu_custom_call.1} parent=1 // pred_check
      _
    $region7: #{tpu_custom_call.1} parent=1 // pred_check_branch
      %28 = sbr.rel (0) target = $region9
    $region8: #{tpu_custom_call.1} parent=1 // pred_region
      %30 = vsyncadd [#allocation6], 0
      %s31 = sshll.u32 %s1, 4
      %s32 = int_to_ptr.hbm [resolvable:$true] %s31
      %s33 = sshll.u32 [#allocation5], 4
      %s34 = int_to_ptr.vmem [resolvable:$true] %s33
      %39 = dma.hbm_to_vmem [thread:$0]  %s32, 12544, %s34, [#allocation6], 128, 128, 8
    $region9: #{tpu_custom_call.1} parent=1 // pred_fallthru
      _
    // Predicated region
    $region10: #{tpu_custom_call.1} parent=1 // pred_check
      _
    $region11: #{tpu_custom_call.1} parent=1 // pred_check_branch
      %41 = sbr.rel (0) target = $region13
    $region12: #{tpu_custom_call.1} parent=1 // pred_region
      _
    $region13: #{tpu_custom_call.1} parent=1 // pred_fallthru
      _
    // Predicated region
    $region14: #{tpu_custom_call.1} parent=1 // pred_check
      _
    $region15: #{tpu_custom_call.1} parent=1 // pred_check_branch
      %43 = sbr.rel (0) target = $region17
    $region16: #{tpu_custom_call.1} parent=1 // pred_region
      %45 = vsyncadd [#allocation6], 0
      %s46 = sshll.u32 %s3, 4
      %s47 = int_to_ptr.hbm [resolvable:$true] %s46
      %s48 = sshll.u32 [#allocation7], 4
      %s49 = int_to_ptr.vmem [resolvable:$true] %s48
      %54 = dma.hbm_to_vmem [thread:$0]  %s47, 2048, %s49, [#allocation6], 128, 128, 8
    $region17: #{tpu_custom_call.1} parent=1 // pred_fallthru
      _
    // Predicated region
    $region18: #{tpu_custom_call.1} parent=1 // pred_check
      _
    $region19: #{tpu_custom_call.1} parent=1 // pred_check_branch
      %56 = sbr.rel (0) target = $region21
    $region20: #{tpu_custom_call.1} parent=1 // pred_region
      _
    $region21: #{tpu_custom_call.1} parent=1 // pred_fallthru
      _
    // Predicated region
    $region22: #{tpu_custom_call.1} parent=1 // pred_check
      _
    $region23: #{tpu_custom_call.1} parent=1 // pred_check_branch
      %58 = sbr.rel (0) target = $region25
    $region24: #{tpu_custom_call.1} parent=1 // pred_region
      %60 = vsyncadd [#allocation9], 0
      %s61 = sshll.u32 %s5, 4
      %s62 = int_to_ptr.hbm [resolvable:$true] %s61
      %s63 = sshll.u32 [#allocation8], 4
      %s64 = int_to_ptr.vmem [resolvable:$true] %s63
      %69 = dma.hbm_to_vmem [thread:$0]  %s62, 2048, %s64, [#allocation9], 128, 128, 8
    $region25: #{tpu_custom_call.1} parent=1 // pred_fallthru
      _
    // Predicated region
    $region26: #{tpu_custom_call.1} parent=1 // pred_check
      _
    $region27: #{tpu_custom_call.1} parent=1 // pred_check_branch
      %71 = sbr.rel (0) target = $region29
    $region28: #{tpu_custom_call.1} parent=1 // pred_region
      _
    $region29: #{tpu_custom_call.1} parent=1 // pred_fallthru
      _
    // Predicated region
    $region30: #{tpu_custom_call.1} parent=1 // pred_check
      _
    $region31: #{tpu_custom_call.1} parent=1 // pred_check_branch
      %73 = sbr.rel (0) target = $region33
    $region32: #{tpu_custom_call.1} parent=1 // pred_region
      %75 = dma.done [#allocation3], 224
    $region33: #{tpu_custom_call.1} parent=1 // pred_fallthru
      _
    // Predicated region
    $region34: #{tpu_custom_call.1} parent=1 // pred_check
      _
    $region35: #{tpu_custom_call.1} parent=1 // pred_check_branch
      %77 = sbr.rel (0) target = $region37
    $region36: #{tpu_custom_call.1} parent=1 // pred_region
      %79 = dma.done [#allocation6], 12544
    $region37: #{tpu_custom_call.1} parent=1 // pred_fallthru
      _
    // Predicated region
    $region38: #{tpu_custom_call.1} parent=1 // pred_check
      _
    $region39: #{tpu_custom_call.1} parent=1 // pred_check_branch
      %81 = sbr.rel (0) target = $region41
    $region40: #{tpu_custom_call.1} parent=1 // pred_region
      %83 = dma.done [#allocation6], 2048
    $region41: #{tpu_custom_call.1} parent=1 // pred_fallthru
      _
    // Predicated region
    $region42: #{tpu_custom_call.1} parent=1 // pred_check
      _
    $region43: #{tpu_custom_call.1} parent=1 // pred_check_branch
      %85 = sbr.rel (0) target = $region45
    $region44: #{tpu_custom_call.1} parent=1 // pred_region
      %87 = dma.done [#allocation9], 2048
    $region45: #{tpu_custom_call.1} parent=1 // pred_fallthru
      _
    %v88 = vld [vmem:[#allocation2] sm:$0xff]
    %v89 = vld [vmem:[#allocation2 + $0x8] sm:$0x3f]
    %v90 = vld [vmem:[#allocation5] sm:$0xff]
    %v91 = vld [vmem:[#allocation5 + $0x8] sm:$0xff]
    %v92 = vld [vmem:[#allocation5 + $0x10] sm:$0xff]
    %v93 = vld [vmem:[#allocation5 + $0x18] sm:$0xff]
    %v94 = vld [vmem:[#allocation5 + $0x20] sm:$0xff]
    %v95 = vld [vmem:[#allocation5 + $0x28] sm:$0xff]
    %v96 = vld [vmem:[#allocation5 + $0x30] sm:$0xff]
    %v97 = vld [vmem:[#allocation5 + $0x38] sm:$0xff]
    %v98 = vld [vmem:[#allocation5 + $0x40] sm:$0xff]
    %v99 = vld [vmem:[#allocation5 + $0x48] sm:$0xff]
    %v100 = vld [vmem:[#allocation5 + $0x50] sm:$0xff]
    %v101 = vld [vmem:[#allocation5 + $0x58] sm:$0xff]
    %v102 = vld [vmem:[#allocation5 + $0x60] sm:$0xff]
    %v103 = vld [vmem:[#allocation5 + $0x68] sm:$0xff]
    %v104 = vld [vmem:[#allocation5 + $0x70] sm:$0xff]
    %v105 = vld [vmem:[#allocation5 + $0x78] sm:$0xff]
    %v106 = vld [vmem:[#allocation5 + $0x80] sm:$0xff]
    %v107 = vld [vmem:[#allocation5 + $0x88] sm:$0xff]
    %v108 = vld [vmem:[#allocation5 + $0x90] sm:$0xff]
    %v109 = vld [vmem:[#allocation5 + $0x98] sm:$0xff]
    %v110 = vld [vmem:[#allocation5 + $0xa0] sm:$0xff]
    %v111 = vld [vmem:[#allocation5 + $0xa8] sm:$0xff]
    %v112 = vld [vmem:[#allocation5 + $0xb0] sm:$0xff]
    %v113 = vld [vmem:[#allocation5 + $0xb8] sm:$0xff]
    %v114 = vld [vmem:[#allocation5 + $0xc0] sm:$0xff]
    %v115 = vld [vmem:[#allocation5 + $0xc8] sm:$0xff]
    %v116 = vld [vmem:[#allocation5 + $0xd0] sm:$0xff]
    %v117 = vld [vmem:[#allocation5 + $0xd8] sm:$0xff]
    %v118 = vld [vmem:[#allocation5 + $0xe0] sm:$0xff]
    %v119 = vld [vmem:[#allocation5 + $0xe8] sm:$0xff]
    %v120 = vld [vmem:[#allocation5 + $0xf0] sm:$0xff]
    %v121 = vld [vmem:[#allocation5 + $0xf8] sm:$0xff]
    %v122 = vld [vmem:[#allocation5 + $0x100] sm:$0xff]
    %v123 = vld [vmem:[#allocation5 + $0x108] sm:$0xff]
    %v124 = vld [vmem:[#allocation5 + $0x110] sm:$0xff]
    %v125 = vld [vmem:[#allocation5 + $0x118] sm:$0xff]
    %v126 = vld [vmem:[#allocation5 + $0x120] sm:$0xff]
    %v127 = vld [vmem:[#allocation5 + $0x128] sm:$0xff]
    %v128 = vld [vmem:[#allocation5 + $0x130] sm:$0xff]
    %v129 = vld [vmem:[#allocation5 + $0x138] sm:$0xff]
    %v130 = vld [vmem:[#allocation5 + $0x140] sm:$0xff]
    %v131 = vld [vmem:[#allocation5 + $0x148] sm:$0xff]
    %v132 = vld [vmem:[#allocation5 + $0x150] sm:$0xff]
    %v133 = vld [vmem:[#allocation5 + $0x158] sm:$0xff]
    %v134 = vld [vmem:[#allocation5 + $0x160] sm:$0xff]
    %v135 = vld [vmem:[#allocation5 + $0x168] sm:$0xff]
    %v136 = vld [vmem:[#allocation5 + $0x170] sm:$0xff]
    %v137 = vld [vmem:[#allocation5 + $0x178] sm:$0xff]
    %v138 = vld [vmem:[#allocation5 + $0x180] sm:$0xff]
    %v139 = vld [vmem:[#allocation5 + $0x188] sm:$0xff]
    %v140 = vld [vmem:[#allocation5 + $0x190] sm:$0xff]
    %v141 = vld [vmem:[#allocation5 + $0x198] sm:$0xff]
    %v142 = vld [vmem:[#allocation5 + $0x1a0] sm:$0xff]
    %v143 = vld [vmem:[#allocation5 + $0x1a8] sm:$0xff]
    %v144 = vld [vmem:[#allocation5 + $0x1b0] sm:$0xff]
    %v145 = vld [vmem:[#allocation5 + $0x1b8] sm:$0xff]
    %v146 = vld [vmem:[#allocation5 + $0x1c0] sm:$0xff]
    %v147 = vld [vmem:[#allocation5 + $0x1c8] sm:$0xff]
    %v148 = vld [vmem:[#allocation5 + $0x1d0] sm:$0xff]
    %v149 = vld [vmem:[#allocation5 + $0x1d8] sm:$0xff]
    %v150 = vld [vmem:[#allocation5 + $0x1e0] sm:$0xff]
    %v151 = vld [vmem:[#allocation5 + $0x1e8] sm:$0xff]
    %v152 = vld [vmem:[#allocation5 + $0x1f0] sm:$0xff]
    %v153 = vld [vmem:[#allocation5 + $0x1f8] sm:$0xff]
    %v154 = vld [vmem:[#allocation5 + $0x200] sm:$0xff]
    %v155 = vld [vmem:[#allocation5 + $0x208] sm:$0xff]
    %v156 = vld [vmem:[#allocation5 + $0x210] sm:$0xff]
    %v157 = vld [vmem:[#allocation5 + $0x218] sm:$0xff]
    %v158 = vld [vmem:[#allocation5 + $0x220] sm:$0xff]
    %v159 = vld [vmem:[#allocation5 + $0x228] sm:$0xff]
    %v160 = vld [vmem:[#allocation5 + $0x230] sm:$0xff]
    %v161 = vld [vmem:[#allocation5 + $0x238] sm:$0xff]
    %v162 = vld [vmem:[#allocation5 + $0x240] sm:$0xff]
    %v163 = vld [vmem:[#allocation5 + $0x248] sm:$0xff]
    %v164 = vld [vmem:[#allocation5 + $0x250] sm:$0xff]
    %v165 = vld [vmem:[#allocation5 + $0x258] sm:$0xff]
    %v166 = vld [vmem:[#allocation5 + $0x260] sm:$0xff]
    %v167 = vld [vmem:[#allocation5 + $0x268] sm:$0xff]
    %v168 = vld [vmem:[#allocation5 + $0x270] sm:$0xff]
    %v169 = vld [vmem:[#allocation5 + $0x278] sm:$0xff]
    %v170 = vld [vmem:[#allocation5 + $0x280] sm:$0xff]
    %v171 = vld [vmem:[#allocation5 + $0x288] sm:$0xff]
    %v172 = vld [vmem:[#allocation5 + $0x290] sm:$0xff]
    %v173 = vld [vmem:[#allocation5 + $0x298] sm:$0xff]
    %v174 = vld [vmem:[#allocation5 + $0x2a0] sm:$0xff]
    %v175 = vld [vmem:[#allocation5 + $0x2a8] sm:$0xff]
    %v176 = vld [vmem:[#allocation5 + $0x2b0] sm:$0xff]
    %v177 = vld [vmem:[#allocation5 + $0x2b8] sm:$0xff]
    %v178 = vld [vmem:[#allocation5 + $0x2c0] sm:$0xff]
    %v179 = vld [vmem:[#allocation5 + $0x2c8] sm:$0xff]
    %v180 = vld [vmem:[#allocation5 + $0x2d0] sm:$0xff]
    %v181 = vld [vmem:[#allocation5 + $0x2d8] sm:$0xff]
    %v182 = vld [vmem:[#allocation5 + $0x2e0] sm:$0xff]
    %v183 = vld [vmem:[#allocation5 + $0x2e8] sm:$0xff]
    %v184 = vld [vmem:[#allocation5 + $0x2f0] sm:$0xff]
    %v185 = vld [vmem:[#allocation5 + $0x2f8] sm:$0xff]
    %v186 = vld [vmem:[#allocation5 + $0x300] sm:$0xff]
    %v187 = vld [vmem:[#allocation5 + $0x308] sm:$0xff]
    %v188 = vld [vmem:[%s2] sm:$0x1]
    %v190 = vperm.slane %v188, 0
    %194 = vst [vmem:[#allocation1] ss:$4 sm:$0xff] %v88
    %s195 = scalar_lea.vmem [#allocation1], 32
    %196 = vst [vmem:[%s195] ss:$4 sm:$0xff] %v89
    %v197 = vld.sshfl [vmem:[#allocation1] sm:$0xff pattern:$0x73625140]
    %v198 = vld.sshfl [vmem:[#allocation1 + $0x8] sm:$0xff pattern:$0x73625140]
    %v199 = vld.sshfl [vmem:[#allocation1 + $0x10] sm:$0xff pattern:$0x73625140]
    %v200 = vld.sshfl [vmem:[#allocation1 + $0x18] sm:$0xff pattern:$0x73625140]
    %v201 = vld.sshfl [vmem:[#allocation1 + $0x20] sm:$0xff pattern:$0x73625140]
    %v202 = vld.sshfl [vmem:[#allocation1 + $0x28] sm:$0xff pattern:$0x73625140]
    %v203 = vld.sshfl [vmem:[#allocation1 + $0x30] sm:$0xff pattern:$0x73625140]
    %vm210 = vcmask 130048
    %v211 = vsel %vm210, %v203, 0
    %213 = vmatpush.msra.mxu0 %v105
    %214 = vmatpush.msra.mxu0 %v104
    %215 = vmatpush.msra.mxu0 %v103
    %216 = vmatpush.msra.mxu0 %v102
    %217 = vmatpush.msra.mxu0 %v101
    %218 = vmatpush.msra.mxu0 %v100
    %219 = vmatpush.msra.mxu0 %v99
    %220 = vmatpush.msra.mxu0 %v98
    %221 = vmatpush.msra.mxu0 %v97
    %222 = vmatpush.msra.mxu0 %v96
    %223 = vmatpush.msra.mxu0 %v95
    %224 = vmatpush.msra.mxu0 %v94
    %225 = vmatpush.msra.mxu0 %v93
    %226 = vmatpush.msra.mxu0 %v92
    %227 = vmatpush.msra.mxu0 %v91
    %228 = vmatpush.msra.mxu0 %v90
    %229 = vmatmul.f32.gmra.mxu0 %v197
    %v230 = vpop.f32.mrf.mxu0
    %v231 = vadd.f32 %v190, %v230
    %232 = vdwg.mxu0
    %233 = vmatpush.msra.mxu0 %v121
    %234 = vmatpush.msra.mxu0 %v120
    %235 = vmatpush.msra.mxu0 %v119
    %236 = vmatpush.msra.mxu0 %v118
    %237 = vmatpush.msra.mxu0 %v117
    %238 = vmatpush.msra.mxu0 %v116
    %239 = vmatpush.msra.mxu0 %v115
    %240 = vmatpush.msra.mxu0 %v114
    %241 = vmatpush.msra.mxu0 %v113
    %242 = vmatpush.msra.mxu0 %v112
    %243 = vmatpush.msra.mxu0 %v111
    %244 = vmatpush.msra.mxu0 %v110
    %245 = vmatpush.msra.mxu0 %v109
    %246 = vmatpush.msra.mxu0 %v108
    %247 = vmatpush.msra.mxu0 %v107
    %248 = vmatpush.msra.mxu0 %v106
    %249 = vmatmul.f32.gmra.mxu0 %v198
    %v250 = vpop.f32.mrf.mxu0
    %v251 = vadd.f32 %v231, %v250
    %252 = vdwg.mxu0
    %253 = vmatpush.msra.mxu0 %v137
    %254 = vmatpush.msra.mxu0 %v136
    %255 = vmatpush.msra.mxu0 %v135
    %256 = vmatpush.msra.mxu0 %v134
    %257 = vmatpush.msra.mxu0 %v133
    %258 = vmatpush.msra.mxu0 %v132
    %259 = vmatpush.msra.mxu0 %v131
    %260 = vmatpush.msra.mxu0 %v130
    %261 = vmatpush.msra.mxu0 %v129
    %262 = vmatpush.msra.mxu0 %v128
    %263 = vmatpush.msra.mxu0 %v127
    %264 = vmatpush.msra.mxu0 %v126
    %265 = vmatpush.msra.mxu0 %v125
    %266 = vmatpush.msra.mxu0 %v124
    %267 = vmatpush.msra.mxu0 %v123
    %268 = vmatpush.msra.mxu0 %v122
    %269 = vmatmul.f32.gmra.mxu0 %v199
    %v270 = vpop.f32.mrf.mxu0
    %v271 = vadd.f32 %v251, %v270
    %272 = vdwg.mxu0
    %273 = vmatpush.msra.mxu0 %v153
    %274 = vmatpush.msra.mxu0 %v152
    %275 = vmatpush.msra.mxu0 %v151
    %276 = vmatpush.msra.mxu0 %v150
    %277 = vmatpush.msra.mxu0 %v149
    %278 = vmatpush.msra.mxu0 %v148
    %279 = vmatpush.msra.mxu0 %v147
    %280 = vmatpush.msra.mxu0 %v146
    %281 = vmatpush.msra.mxu0 %v145
    %282 = vmatpush.msra.mxu0 %v144
    %283 = vmatpush.msra.mxu0 %v143
    %284 = vmatpush.msra.mxu0 %v142
    %285 = vmatpush.msra.mxu0 %v141
    %286 = vmatpush.msra.mxu0 %v140
    %287 = vmatpush.msra.mxu0 %v139
    %288 = vmatpush.msra.mxu0 %v138
    %289 = vmatmul.f32.gmra.mxu0 %v200
    %v290 = vpop.f32.mrf.mxu0
    %v291 = vadd.f32 %v271, %v290
    %292 = vdwg.mxu0
    %293 = vmatpush.msra.mxu0 %v169
    %294 = vmatpush.msra.mxu0 %v168
    %295 = vmatpush.msra.mxu0 %v167
    %296 = vmatpush.msra.mxu0 %v166
    %297 = vmatpush.msra.mxu0 %v165
    %298 = vmatpush.msra.mxu0 %v164
    %299 = vmatpush.msra.mxu0 %v163
    %300 = vmatpush.msra.mxu0 %v162
    %301 = vmatpush.msra.mxu0 %v161
    %302 = vmatpush.msra.mxu0 %v160
    %303 = vmatpush.msra.mxu0 %v159
    %304 = vmatpush.msra.mxu0 %v158
    %305 = vmatpush.msra.mxu0 %v157
    %306 = vmatpush.msra.mxu0 %v156
    %307 = vmatpush.msra.mxu0 %v155
    %308 = vmatpush.msra.mxu0 %v154
    %309 = vmatmul.f32.gmra.mxu0 %v201
    %v310 = vpop.f32.mrf.mxu0
    %v311 = vadd.f32 %v291, %v310
    %312 = vdwg.mxu0
    %313 = vmatpush.msra.mxu0 %v185
    %314 = vmatpush.msra.mxu0 %v184
    %315 = vmatpush.msra.mxu0 %v183
    %316 = vmatpush.msra.mxu0 %v182
    %317 = vmatpush.msra.mxu0 %v181
    %318 = vmatpush.msra.mxu0 %v180
    %319 = vmatpush.msra.mxu0 %v179
    %320 = vmatpush.msra.mxu0 %v178
    %321 = vmatpush.msra.mxu0 %v177
    %322 = vmatpush.msra.mxu0 %v176
    %323 = vmatpush.msra.mxu0 %v175
    %324 = vmatpush.msra.mxu0 %v174
    %325 = vmatpush.msra.mxu0 %v173
    %326 = vmatpush.msra.mxu0 %v172
    %327 = vmatpush.msra.mxu0 %v171
    %328 = vmatpush.msra.mxu0 %v170
    %329 = vmatmul.f32.gmra.mxu0 %v202
    %v330 = vpop.f32.mrf.mxu0
    %v331 = vadd.f32 %v311, %v330
    %332 = vdwg.mxu0
    %333 = vmatpush.msra.mxu0 0.0
    %334 = vmatpush.msra.mxu0 0.0
    %335 = vmatpush.msra.mxu0 0.0
    %336 = vmatpush.msra.mxu0 0.0
    %337 = vmatpush.msra.mxu0 0.0
    %338 = vmatpush.msra.mxu0 0.0
    %339 = vmatpush.msra.mxu0 0.0
    %340 = vmatpush.msra.mxu0 0.0
    %341 = vmatpush.msra.mxu0 0.0
    %342 = vmatpush.msra.mxu0 0.0
    %343 = vmatpush.msra.mxu0 0.0
    %344 = vmatpush.msra.mxu0 0.0
    %345 = vmatpush.msra.mxu0 0.0
    %346 = vmatpush.msra.mxu0 0.0
    %347 = vmatpush.msra.mxu0 %v187
    %348 = vmatpush.msra.mxu0 %v186
    %349 = vmatmul.f32.gmra.mxu0 %v211
    %v350 = vpop.f32.mrf.mxu0
    %v351 = vadd.f32 %v331, %v350
    %352 = vdwg.mxu0
    %v353 = vmax.f32 %v351, 0.0
    %v354 = vld [vmem:[#allocation7] sm:$0xff]
    %v355 = vld [vmem:[#allocation7 + $0x8] sm:$0xff]
    %v356 = vld [vmem:[#allocation7 + $0x10] sm:$0xff]
    %v357 = vld [vmem:[#allocation7 + $0x18] sm:$0xff]
    %v358 = vld [vmem:[#allocation7 + $0x20] sm:$0xff]
    %v359 = vld [vmem:[#allocation7 + $0x28] sm:$0xff]
    %v360 = vld [vmem:[#allocation7 + $0x30] sm:$0xff]
    %v361 = vld [vmem:[#allocation7 + $0x38] sm:$0xff]
    %v362 = vld [vmem:[#allocation7 + $0x40] sm:$0xff]
    %v363 = vld [vmem:[#allocation7 + $0x48] sm:$0xff]
    %v364 = vld [vmem:[#allocation7 + $0x50] sm:$0xff]
    %v365 = vld [vmem:[#allocation7 + $0x58] sm:$0xff]
    %v366 = vld [vmem:[#allocation7 + $0x60] sm:$0xff]
    %v367 = vld [vmem:[#allocation7 + $0x68] sm:$0xff]
    %v368 = vld [vmem:[#allocation7 + $0x70] sm:$0xff]
    %v369 = vld [vmem:[#allocation7 + $0x78] sm:$0xff]
    %v370 = vld [vmem:[%s4] sm:$0x1]
    %v372 = vperm.slane %v370, 0
    %374 = vmatpush.msra.mxu0 %v369
    %375 = vmatpush.msra.mxu0 %v368
    %376 = vmatpush.msra.mxu0 %v367
    %377 = vmatpush.msra.mxu0 %v366
    %378 = vmatpush.msra.mxu0 %v365
    %379 = vmatpush.msra.mxu0 %v364
    %380 = vmatpush.msra.mxu0 %v363
    %381 = vmatpush.msra.mxu0 %v362
    %382 = vmatpush.msra.mxu0 %v361
    %383 = vmatpush.msra.mxu0 %v360
    %384 = vmatpush.msra.mxu0 %v359
    %385 = vmatpush.msra.mxu0 %v358
    %386 = vmatpush.msra.mxu0 %v357
    %387 = vmatpush.msra.mxu0 %v356
    %388 = vmatpush.msra.mxu0 %v355
    %389 = vmatpush.msra.mxu0 %v354
    %390 = vmatmul.f32.gmra.mxu0 %v353
    %v391 = vpop.f32.mrf.mxu0
    %v392 = vadd.f32 %v372, %v391
    %393 = vdwg.mxu0
    %v394 = vmax.f32 %v392, 0.0
    %v395 = vld [vmem:[#allocation8] sm:$0xff]
    %v396 = vld [vmem:[#allocation8 + $0x8] sm:$0xff]
    %v397 = vld [vmem:[#allocation8 + $0x10] sm:$0xff]
    %v398 = vld [vmem:[#allocation8 + $0x18] sm:$0xff]
    %v399 = vld [vmem:[#allocation8 + $0x20] sm:$0xff]
    %v400 = vld [vmem:[#allocation8 + $0x28] sm:$0xff]
    %v401 = vld [vmem:[#allocation8 + $0x30] sm:$0xff]
    %v402 = vld [vmem:[#allocation8 + $0x38] sm:$0xff]
    %v403 = vld [vmem:[#allocation8 + $0x40] sm:$0xff]
    %v404 = vld [vmem:[#allocation8 + $0x48] sm:$0xff]
    %v405 = vld [vmem:[#allocation8 + $0x50] sm:$0xff]
    %v406 = vld [vmem:[#allocation8 + $0x58] sm:$0xff]
    %v407 = vld [vmem:[#allocation8 + $0x60] sm:$0xff]
    %v408 = vld [vmem:[#allocation8 + $0x68] sm:$0xff]
    %v409 = vld [vmem:[#allocation8 + $0x70] sm:$0xff]
    %v410 = vld [vmem:[#allocation8 + $0x78] sm:$0xff]
    %v411 = vld [vmem:[%s6] sm:$0x1]
    %v413 = vperm.slane %v411, 0
    %415 = vmatpush.msra.mxu0 %v410
    %416 = vmatpush.msra.mxu0 %v409
    %417 = vmatpush.msra.mxu0 %v408
    %418 = vmatpush.msra.mxu0 %v407
    %419 = vmatpush.msra.mxu0 %v406
    %420 = vmatpush.msra.mxu0 %v405
    %421 = vmatpush.msra.mxu0 %v404
    %422 = vmatpush.msra.mxu0 %v403
    %423 = vmatpush.msra.mxu0 %v402
    %424 = vmatpush.msra.mxu0 %v401
    %425 = vmatpush.msra.mxu0 %v400
    %426 = vmatpush.msra.mxu0 %v399
    %427 = vmatpush.msra.mxu0 %v398
    %428 = vmatpush.msra.mxu0 %v397
    %429 = vmatpush.msra.mxu0 %v396
    %430 = vmatpush.msra.mxu0 %v395
    %431 = vmatmul.f32.gmra.mxu0 %v394
    %v432 = vpop.f32.mrf.mxu0
    %v433 = vadd.f32 %v413, %v432
    %434 = vdwg.mxu0
    %435 = vst [vmem:[#allocation10] sm:$0x3] %v433
    // Predicated region
    $region46: #{tpu_custom_call.1} parent=1 // pred_check
      _
    $region47: #{tpu_custom_call.1} parent=1 // pred_check_branch
      %437 = sbr.rel (0) target = $region49
    $region48: #{tpu_custom_call.1} parent=1 // pred_region
      %439 = vsyncadd [#allocation4], 0
      %s441 = sshll.u32 [#allocation10], 4
      %s442 = int_to_ptr.vmem [resolvable:$true] %s441
      %s443 = sshll.u32 %s7, 4
      %s444 = int_to_ptr.hbm [resolvable:$true] %s443
      %446 = dma.vmem_to_hbm [thread:$0]  %s442, 32, %s444, [#allocation4]
    $region49: #{tpu_custom_call.1} parent=1 // pred_fallthru
      _
    // Predicated region
    $region50: #{tpu_custom_call.1} parent=1 // pred_check
      _
    $region51: #{tpu_custom_call.1} parent=1 // pred_check_branch
      %448 = sbr.rel (0) target = $region53
    $region52: #{tpu_custom_call.1} parent=1 // pred_region
      %450 = dma.done [#allocation4], 32
    $region53: #{tpu_custom_call.1} parent=1 // pred_fallthru
      _
    %451 = vsyncpa [#allocation3], 1
    %452 = vsyncpa [#allocation6], 1
    %453 = vsyncpa [#allocation9], 1
    %454 = vsyncpa [#allocation4], 1

</llo_original>
